<compile_context>
chip_gen: v5e
topology: v5e:2x2
jax: 0.10.0
libtpu: 0.0.40
codegen_flags: <defaults>
</compile_context>

<pallas_src>
import jax
import jax.numpy as jnp
from jax.experimental import pallas as pl
from jax.experimental.pallas import tpu as pltpu


NEG_INF = -1e30  # f32-safe large negative; avoids -inf so (m_old - m_new) stays finite.


# ---------------------------------------------------------------------------
# Tiling helpers
# ---------------------------------------------------------------------------
def _pick_tm(n, pref=128):
    """Target-block rows.  Multiples of 32 keep the int8 adjacency block
    sublane-legal (and bf16 xr blocks legal); prefer >=2 blocks so both v7x
    TensorCores get work on the parallel axis."""
    for cand in (pref, pref // 2, pref // 4):
        if 32 <= cand <= n and n % cand == 0 and n // cand >= 2:
            return cand
    for cand in (pref, pref // 2, pref // 4):
        if 32 <= cand <= n and n % cand == 0:
            return cand
    return n  # full dim is always layout-legal


def _pick_ts(n, pref=128):
    """Source-block columns = lane dim of the int8 adjacency block, so it must be
    a multiple of 128 or the full node count."""
    if n >= pref and n % pref == 0:
        return pref
    return n


# ---------------------------------------------------------------------------
# Kernel 1: fused projections for all heads.
#   [xl | xr] = x @ [Wl_all | Wr_all] + [bl_all | br_all]   (one 256-wide matmul)
#   Outputs stored in bf16 (attention kernel re-reads xl N/TM times).
# ---------------------------------------------------------------------------
def _proj_kernel(x_ref, w_ref, b_ref, xl_ref, xr_ref):
    hc = xl_ref.shape[1]
    res = jnp.dot(x_ref[...], w_ref[...],
                  preferred_element_type=jnp.float32) + b_ref[...]
    xl_ref[...] = res[:, :hc].astype(xl_ref.dtype)   # lin_l(x): source messages
    xr_ref[...] = res[:, hc:].astype(xr_ref.dtype)   # lin_r(x): target nodes


def fused_projection(x, w_fused, b_fused, hc, *, tile_m):
    n, fin = x.shape
    two_hc = w_fused.shape[1]
    return pl.pallas_call(
        _proj_kernel,
        out_shape=(jax.ShapeDtypeStruct((n, hc), jnp.bfloat16),
                   jax.ShapeDtypeStruct((n, hc), jnp.bfloat16)),
        grid_spec=pltpu.PrefetchScalarGridSpec(
            num_scalar_prefetch=0,
            grid=(n // tile_m,),
            in_specs=[
                pl.BlockSpec((tile_m, fin), lambda i: (i, 0)),
                pl.BlockSpec((fin, two_hc), lambda i: (0, 0)),
                pl.BlockSpec((1, two_hc), lambda i: (0, 0)),
            ],
            out_specs=[pl.BlockSpec((tile_m, hc), lambda i: (i, 0)),
                       pl.BlockSpec((tile_m, hc), lambda i: (i, 0))],
        ),
        compiler_params=pltpu.CompilerParams(dimension_semantics=("parallel",)),
    )(x, w_fused, b_fused)


# ---------------------------------------------------------------------------
# Kernel 2: GATv2 attention + aggregation + epilogue, blocked online softmax.
#   grid = (target blocks [parallel], source blocks [arbitrary])
#   Inside a grid step the TS source block is processed in <=64-wide sub-chunks
#   so the [TM, sub, HC] pair temporary stays small (v5e-safe).
# ---------------------------------------------------------------------------
def make_attn_kernel(H, C, ts, sub, neg_slope=0.2, out_slope=0.1):
    n_chunks = ts // sub

    def kernel(xr_ref, xl_ref, adj_ref, attf_ref, bias_ref, out_ref,
               m_sc, l_sc, acc_sc):
        ki = pl.program_id(1)
        nk = pl.num_programs(1)

        @pl.when(ki == 0)
        def _init():
            m_sc[...] = jnp.full(m_sc.shape, NEG_INF, jnp.float32)
            l_sc[...] = jnp.zeros(l_sc.shape, jnp.float32)
            acc_sc[...] = jnp.zeros(acc_sc.shape, jnp.float32)

        mask = adj_ref[...] > 0                      # int8 compare, no f32 convert
        xr = xr_ref[...]                             # [TM, HC] bf16  (lin_r, targets)
        attv = attf_ref[...]                         # [1, HC]  f32   (attention vecs)

        for j in range(n_chunks):                    # small static unroll (<=4)
            xl_c = xl_ref[j * sub:(j + 1) * sub, :]  # [sub, HC] bf16 (lin_l, sources)
            mask_c = mask[:, j * sub:(j + 1) * sub]  # [TM, sub]

            # All-head pair + leaky_relu in bf16, lane axis = HC = 128 (full VPU
            # width, 2x VALU throughput on v6e/v7x).  maximum() == leaky_relu for
            # slope in (0,1): saves the compare.
            pair = xr[:, None, :] + xl_c[None, :, :]          # [TM, sub, HC]
            pair = jnp.maximum(pair, neg_slope * pair)

            accv = acc_sc[...]                                # [TM, HC] f32
            new_acc = []
            for h in range(H):                                # static unroll
                sl = slice(h * C, (h + 1) * C)
                # att multiply fused with the C-reduction (no second [TM,sub,HC]
                # temporary); f32 att promotes the product -> f32 accumulation.
                e = jnp.sum(pair[:, :, sl] * attv[:, sl], axis=-1)   # [TM, sub]
                e = jnp.where(mask_c, e, NEG_INF)

                m_old = m_sc[h]                                          # [TM, 1]
                m_new = jnp.maximum(m_old, jnp.max(e, axis=1, keepdims=True))
                corr = jnp.exp(m_old - m_new)                            # [TM, 1]
                p = jnp.where(mask_c, jnp.exp(e - m_new), 0.0)           # [TM, sub]

                l_sc[h] = corr * l_sc[h] + jnp.sum(p, axis=1, keepdims=True)
                m_sc[h] = m_new
                delta = jnp.dot(p.astype(xl_c.dtype), xl_c[:, sl],
                                preferred_element_type=jnp.float32)      # [TM, C]
                new_acc.append(corr * accv[:, sl] + delta)

            # One dense, 128-lane accumulator write per chunk (no masked 32-lane
            # slice stores on the single vst slot).
            acc_sc[...] = jnp.concatenate(new_acc, axis=1)

        @pl.when(ki == nk - 1)
        def _finalize():
            acc = acc_sc[...]
            out = None
            for h in range(H):
                inv = pl.reciprocal(l_sc[h], approx=False)   # exact; still EUP
                part = acc[:, h * C:(h + 1) * C] * inv
                out = part if out is None else out + part
            out = out * (1.0 / H) + bias_ref[...]            # concat=False: head mean
            out_ref[...] = jnp.maximum(out, out_slope * out)  # outer leaky_relu(0.1)
            # F.dropout(x, p, training=False) is identity.

    return kernel


def gatv2_conv(x, layer_params, adj_i8, *, heads, out_ch):
    """One GATv2Conv(concat=False) layer + outer F.leaky_relu(0.1), fused."""
    w_fused, b_fused, att_flat, bias = layer_params
    N = x.shape[0]
    H, C = heads, out_ch
    HC = H * C
    TM = _pick_tm(N)
    TS = _pick_ts(N)
    assert N % TM == 0 and N % TS == 0, "node count must divide by the tile sizes"
    # If VMEM-limited, shrink/sub-chunk TS (the reduction/source axis): the output
    # block, the [TM,HC] accumulator and the parallel target axis stay intact.
    if TS % 64 == 0:
        SUB = 64
    elif TS % 32 == 0:
        SUB = 32
    else:
        SUB = TS

    xl_all, xr_all = fused_projection(x, w_fused, b_fused, HC, tile_m=TM)

    kernel = make_attn_kernel(H, C, TS, SUB)
    return pl.pallas_call(
        kernel,
        out_shape=jax.ShapeDtypeStruct((N, C), jnp.float32),
        grid_spec=pltpu.PrefetchScalarGridSpec(
            num_scalar_prefetch=0,
            grid=(N // TM, N // TS),
            in_specs=[
                pl.BlockSpec((TM, HC), lambda i, k: (i, 0)),   # lin_r(x), bf16 targets
                pl.BlockSpec((TS, HC), lambda i, k: (k, 0)),   # lin_l(x), bf16 sources
                pl.BlockSpec((TM, TS), lambda i, k: (i, k)),   # adjacency mask (int8)
                pl.BlockSpec((1, HC), lambda i, k: (0, 0)),    # packed attention vecs
                pl.BlockSpec((1, C), lambda i, k: (0, 0)),     # conv bias
            ],
            out_specs=pl.BlockSpec((TM, C), lambda i, k: (i, 0)),
            scratch_shapes=[
                pltpu.VMEM((H, TM, 1), jnp.float32),   # running max per head
                pltpu.VMEM((H, TM, 1), jnp.float32),   # running sum per head
                pltpu.VMEM((TM, HC), jnp.float32),     # lane-dense (128) accumulator
            ],
        ),
        compiler_params=pltpu.CompilerParams(
            dimension_semantics=("parallel", "arbitrary"),
            vmem_limit_bytes=32 * 1024 * 1024),
    )(xr_all, xl_all, adj_i8, att_flat, bias)


# ---------------------------------------------------------------------------
# Kernel 3: global_add_pool + BatchNorm1d(eval) + Linear, blocked over nodes.
#   grid = (node blocks [arbitrary]); pooled sums accumulate in VMEM scratch.
# ---------------------------------------------------------------------------
def pool_bn_fc_kernel(oh_ref, x_ref, gamma_ref, beta_ref, mean_ref, var_ref,
                      fcw_ref, fcb_ref, out_ref, pooled_sc):
    i = pl.program_id(0)

    @pl.when(i == 0)
    def _():
        pooled_sc[...] = jnp.zeros_like(pooled_sc)

    pooled_sc[...] += jnp.dot(oh_ref[...], x_ref[...],
                              preferred_element_type=jnp.float32)

    @pl.when(i == pl.num_programs(0) - 1)
    def _():
        inv = jax.lax.rsqrt(var_ref[...] + 1e-5)
        normed = (pooled_sc[...] - mean_ref[...]) * inv * gamma_ref[...] + beta_ref[...]
        out_ref[...] = jnp.dot(normed, fcw_ref[...],
                               preferred_element_type=jnp.float32) + fcb_ref[...]


def pool_bn_fc(x, onehot, params):
    N, C = x.shape
    G = onehot.shape[0]
    latent = params["fc_w"].shape[1]
    TN = 128 if (N >= 128 and N % 128 == 0) else N
    return pl.pallas_call(
        pool_bn_fc_kernel,
        out_shape=jax.ShapeDtypeStruct((G, latent), jnp.float32),
        grid_spec=pltpu.PrefetchScalarGridSpec(
            num_scalar_prefetch=0,
            grid=(N // TN,),
            in_specs=[
                pl.BlockSpec((G, TN), lambda i: (0, i)),       # one-hot batch matrix
                pl.BlockSpec((TN, C), lambda i: (i, 0)),       # node features
                pl.BlockSpec((1, C), lambda i: (0, 0)),        # bn gamma
                pl.BlockSpec((1, C), lambda i: (0, 0)),        # bn beta
                pl.BlockSpec((1, C), lambda i: (0, 0)),        # bn running mean
                pl.BlockSpec((1, C), lambda i: (0, 0)),        # bn running var
                pl.BlockSpec((C, latent), lambda i: (0, 0)),   # fc weight
                pl.BlockSpec((1, latent), lambda i: (0, 0)),   # fc bias
            ],
            out_specs=pl.BlockSpec((G, latent), lambda i: (0, 0)),
            scratch_shapes=[pltpu.VMEM((G, C), jnp.float32)],
        ),
        compiler_params=pltpu.CompilerParams(dimension_semantics=("arbitrary",)),
    )(onehot, x, params["bn_gamma"], params["bn_beta"],
      params["bn_mean"], params["bn_var"], params["fc_w"], params["fc_b"])


def gatv2_forward(params, x, adj_i8, onehot, heads, hidden_dim):
    for layer_params in params["convs"]:
        x = gatv2_conv(x, layer_params, adj_i8, heads=heads, out_ch=hidden_dim)
    return pool_bn_fc(x, onehot, params)


def init_params(key, input_dim, hidden_dim, latent_dim, n_layers, heads):
    H, C = heads, hidden_dim
    params = {"convs": []}
    dims_in = [input_dim] + [hidden_dim] * (n_layers - 1)
    for fin in dims_in:
        key, *ks = jax.random.split(key, 7)
        wl = 0.1 * jax.random.normal(ks[0], (fin, H * C), jnp.float32)
        bl = 0.1 * jax.random.normal(ks[1], (H, C), jnp.float32)
        wr = 0.1 * jax.random.normal(ks[2], (fin, H * C), jnp.float32)
        br = 0.1 * jax.random.normal(ks[3], (H, C), jnp.float32)
        att = 0.1 * jax.random.normal(ks[4], (H, C), jnp.float32)
        bias = 0.1 * jax.random.normal(ks[5], (1, C), jnp.float32)
        # Fuse lin_l / lin_r (all heads) into one wide projection + packed params.
        w_fused = jnp.concatenate([wl, wr], axis=1)                   # [fin, 2*H*C]
        b_fused = jnp.concatenate([bl.reshape(1, H * C),
                                   br.reshape(1, H * C)], axis=1)     # [1, 2*H*C]
        att_flat = att.reshape(1, H * C)                              # [1, H*C]
        params["convs"].append((w_fused, b_fused, att_flat, bias))
    key, k1, k2 = jax.random.split(key, 3)
    # BatchNorm1d at default init (eval mode, running stats)
    params["bn_gamma"] = jnp.ones((1, hidden_dim), jnp.float32)
    params["bn_beta"] = jnp.zeros((1, hidden_dim), jnp.float32)
    params["bn_mean"] = jnp.zeros((1, hidden_dim), jnp.float32)
    params["bn_var"] = jnp.ones((1, hidden_dim), jnp.float32)
    params["fc_w"] = 0.1 * jax.random.normal(k1, (hidden_dim, latent_dim), jnp.float32)
    params["fc_b"] = 0.1 * jax.random.normal(k2, (1, latent_dim), jnp.float32)
    return params


if __name__ == "__main__":
    input_dim, hidden_dim, latent_dim, n_layers, heads = 8, 32, 16, 2, 4
    nodes_per_graph, n_graphs = 8, 2
    N = nodes_per_graph * n_graphs

    key = jax.random.PRNGKey(0)
    key, kx = jax.random.split(key)
    x = jax.random.normal(kx, (N, input_dim), jnp.float32)

    # deterministic edge_index: bidirectional ring within each graph
    src, dst = [], []
    for g in range(n_graphs):
        base = g * nodes_per_graph
        for i in range(nodes_per_graph):
            j = (i + 1) % nodes_per_graph
            src += [base + i, base + j]
            dst += [base + j, base + i]
    edge_index = jnp.array([src, dst], dtype=jnp.int32)   # [2, E]

    # dense adjacency mask adj[target, source] as int8 + self loops (GATv2Conv default)
    adj = jnp.zeros((N, N), jnp.int8)
    adj = adj.at[edge_index[1], edge_index[0]].set(1)
    adj = adj.at[jnp.arange(N), jnp.arange(N)].set(1)

    batch = jnp.repeat(jnp.arange(n_graphs, dtype=jnp.int32), nodes_per_graph)
    onehot = (batch[None, :] ==
              jnp.arange(n_graphs, dtype=jnp.int32)[:, None]).astype(jnp.float32)

    params = init_params(key, input_dim, hidden_dim, latent_dim, n_layers, heads)
    out = gatv2_forward(params, x, adj, onehot, heads, hidden_dim)
    out = jax.block_until_ready(out)
    assert out.shape == (n_graphs, latent_dim)
    # TODO(synk): training-mode dropout / batch-stat BatchNorm not implemented
    # (inference semantics only).
    print("KERNEL_OK")
</pallas_src>

<mosaic_0001>
module attributes {stable_mosaic.version = 11 : i64} {
  func.func @_proj_kernel(%arg0: i32, %arg1: memref<16x8xf32, #tpu.memory_space<vmem>>, %arg2: memref<8x256xf32, #tpu.memory_space<vmem>>, %arg3: memref<1x256xf32, #tpu.memory_space<vmem>>, %arg4: memref<16x128xbf16, #tpu.memory_space<vmem>>, %arg5: memref<16x128xbf16, #tpu.memory_space<vmem>>) attributes {dimension_semantics = [#tpu.dimension_semantics<parallel>], iteration_bounds = array<i64: 1>, scalar_prefetch = 0 : i64, scratch_operands = 0 : i64, tpu.core_type = #tpu.core_type<tc>, window_params = [{transform_indices = @transform_0, window_bounds = array<i64: 16, 8>}, {pipeline_mode = #tpu.pipeline_mode<synchronous>, transform_indices = @transform_1, window_bounds = array<i64: 8, 256>}, {pipeline_mode = #tpu.pipeline_mode<synchronous>, transform_indices = @transform_2, window_bounds = array<i64: 1, 256>}, {transform_indices = @transform_3, window_bounds = array<i64: 16, 128>}, {transform_indices = @transform_4, window_bounds = array<i64: 16, 128>}]} {
    %c0 = arith.constant 0 : index
    %c0_0 = arith.constant 0 : index
    %0 = vector.load %arg1[%c0, %c0_0] : memref<16x8xf32, #tpu.memory_space<vmem>>, vector<16x8xf32>
    %c0_1 = arith.constant 0 : index
    %c0_2 = arith.constant 0 : index
    %1 = vector.load %arg2[%c0_1, %c0_2] : memref<8x256xf32, #tpu.memory_space<vmem>>, vector<8x256xf32>
    %cst = arith.constant dense<0.000000e+00> : vector<16x256xf32>
    %2 = tpu.matmul %0, %1, %cst {dimension_numbers = #tpu.dot_dimension_numbers<[1], [0], [0], [1], [0, 0, 1, 1], [], []>} : vector<16x8xf32>, vector<8x256xf32>, vector<16x256xf32> -> vector<16x256xf32>
    %c0_3 = arith.constant 0 : index
    %c0_4 = arith.constant 0 : index
    %3 = vector.load %arg3[%c0_3, %c0_4] : memref<1x256xf32, #tpu.memory_space<vmem>>, vector<1x256xf32>
    %4 = vector.broadcast %3 : vector<1x256xf32> to vector<16x256xf32>
    %5 = arith.addf %2, %4 : vector<16x256xf32>
    %6 = vector.extract_strided_slice %5 {offsets = [0, 0], sizes = [16, 128], strides = [1, 1]} : vector<16x256xf32> to vector<16x128xf32>
    %7 = arith.truncf %6 : vector<16x128xf32> to vector<16x128xbf16>
    %c0_5 = arith.constant 0 : index
    %c0_6 = arith.constant 0 : index
    %8 = vector.load %arg4[%c0_5, %c0_6] : memref<16x128xbf16, #tpu.memory_space<vmem>>, vector<16x128xbf16>
    tpu.vector_store %arg4[%c0_5, %c0_6], %7 {strides = array<i32>} : memref<16x128xbf16, #tpu.memory_space<vmem>>, vector<16x128xbf16>,
    %9 = vector.extract_strided_slice %5 {offsets = [0, 128], sizes = [16, 128], strides = [1, 1]} : vector<16x256xf32> to vector<16x128xf32>
    %10 = arith.truncf %9 : vector<16x128xf32> to vector<16x128xbf16>
    %c0_7 = arith.constant 0 : index
    %c0_8 = arith.constant 0 : index
    %11 = vector.load %arg5[%c0_7, %c0_8] : memref<16x128xbf16, #tpu.memory_space<vmem>>, vector<16x128xbf16>
    tpu.vector_store %arg5[%c0_7, %c0_8], %10 {strides = array<i32>} : memref<16x128xbf16, #tpu.memory_space<vmem>>, vector<16x128xbf16>,
    return
  }
  func.func @transform_0(%arg0: i32) -> (i32, i32) {
    %c0_i32 = arith.constant 0 : i32
    %c0_i32_0 = arith.constant 0 : i32
    return %arg0, %c0_i32 : i32, i32
  }
  func.func @transform_1(%arg0: i32) -> (i32, i32) {
    %c0_i32 = arith.constant 0 : i32
    %c0_i32_0 = arith.constant 0 : i32
    %c0_i32_1 = arith.constant 0 : i32
    return %c0_i32, %c0_i32_0 : i32, i32
  }
  func.func @transform_2(%arg0: i32) -> (i32, i32) {
    %c0_i32 = arith.constant 0 : i32
    %c0_i32_0 = arith.constant 0 : i32
    %c0_i32_1 = arith.constant 0 : i32
    return %c0_i32, %c0_i32_0 : i32, i32
  }
  func.func @transform_3(%arg0: i32) -> (i32, i32) {
    %c0_i32 = arith.constant 0 : i32
    %c0_i32_0 = arith.constant 0 : i32
    return %arg0, %c0_i32 : i32, i32
  }
  func.func @transform_4(%arg0: i32) -> (i32, i32) {
    %c0_i32 = arith.constant 0 : i32
    %c0_i32_0 = arith.constant 0 : i32
    return %arg0, %c0_i32 : i32, i32
  }
}

</mosaic_0001>

<llo_original>
// kernel: tpu_custom_call.1
$region0: #{tpu_custom_call.1}
  #allocation0 [shape = 'u32[]', space=smem, size = 0x4, offset = 0x4, fixed_abs, tag = 'smem constant byte address 0x4 - core index']
  #allocation1 [shape = 'u32[72,128]{1,0:T(1,128)}', space=vmem, size = 0x9000, scoped, tag = 'internal scratch']
  %s0 = inlined_call_operand.vmem [shape: f32[16,8], index: 0, kind: input, shape index: {}]
  %s1 = inlined_call_operand.vmem [shape: f32[8,256], index: 1, kind: input, shape index: {}]
  %s2 = inlined_call_operand.vmem [shape: f32[1,256], index: 2, kind: input, shape index: {}]
  %s3 = inlined_call_operand.hbm [shape: bf16[16,128], index: 3, kind: output, shape index: {0}]
  %s4 = inlined_call_operand.hbm [shape: bf16[16,128], index: 4, kind: output, shape index: {1}]
  %5 = xla_tuple %s3, %s4
  %s6 = sld [smem:[#allocation0]]
  $region30: #{tpu_custom_call.1} parent=0
    _
  %s8 = ssub.s32 1, %s6
  %s9 = scalar_select 0, %s8, %s6
  $region1: #{tpu_custom_call.1} parent=0
    #allocation2 [shape = 'u8[4096]{0}', space=vmem, size = 0x1000, scoped, tag = 'output window, operand 0, single buffered']
    #allocation3 [shape = 's32[1]{0}', space=sflag, size = 0x4, scoped, tag = 'scoped memory for tpu_custom_call.1']
    #allocation4 [shape = 'u8[4096]{0}', space=vmem, size = 0x1000, scoped, tag = 'output window, operand 1, single buffered']
    #allocation5 [shape = 's32[1]{0}', space=sflag, size = 0x4, scoped, tag = 'scoped memory for tpu_custom_call.1']
    %10 = vsyncpa [#allocation3], 0
    %11 = vsyncpa [#allocation5], 0
    // Predicated region
    $region2: #{tpu_custom_call.1} parent=1 // pred_check
      _
    $region3: #{tpu_custom_call.1} parent=1 // pred_check_branch
      %13 = sbr.rel (0) target = $region5
    $region4: #{tpu_custom_call.1} parent=1 // pred_region
      _
    $region5: #{tpu_custom_call.1} parent=1 // pred_fallthru
      _
    // Predicated region
    $region6: #{tpu_custom_call.1} parent=1 // pred_check
      _
    $region7: #{tpu_custom_call.1} parent=1 // pred_check_branch
      %15 = sbr.rel (0) target = $region9
    $region8: #{tpu_custom_call.1} parent=1 // pred_region
      _
    $region9: #{tpu_custom_call.1} parent=1 // pred_fallthru
      _
    // Predicated region
    $region10: #{tpu_custom_call.1} parent=1 // pred_check
      _
    $region11: #{tpu_custom_call.1} parent=1 // pred_check_branch
      %17 = sbr.rel (0) target = $region13
    $region12: #{tpu_custom_call.1} parent=1 // pred_region
      _
    $region13: #{tpu_custom_call.1} parent=1 // pred_fallthru
      _
    %v18 = vld [vmem:[%s0] sm:$0xff]
    %v19 = vld [vmem:[%s0 + $0x8] sm:$0xff]
    %v20 = vld [vmem:[%s1] sm:$0xff]
    %v21 = vld [vmem:[%s1 + $0x8] sm:$0xff]
    %v22 = vld [vmem:[%s2] sm:$0x3]
    %v24 = vperm.slane %v22, 0
    %v25 = vperm.slane %v22, 1
    %vm28 = vcmask 64512
    %v30 = vsel %vm28, %v18, 0
    %v33 = vsel %vm28, %v19, 0
    %35 = vmatpush.msra.mxu0 0.0
    %36 = vmatpush.msra.mxu0 0.0
    %37 = vmatpush.msra.mxu0 0.0
    %38 = vmatpush.msra.mxu0 0.0
    %39 = vmatpush.msra.mxu0 0.0
    %40 = vmatpush.msra.mxu0 0.0
    %41 = vmatpush.msra.mxu0 0.0
    %42 = vmatpush.msra.mxu0 0.0
    %43 = vmatpush.msra.mxu0 0.0
    %44 = vmatpush.msra.mxu0 0.0
    %45 = vmatpush.msra.mxu0 0.0
    %46 = vmatpush.msra.mxu0 0.0
    %47 = vmatpush.msra.mxu0 0.0
    %48 = vmatpush.msra.mxu0 0.0
    %49 = vmatpush.msra.mxu0 0.0
    %50 = vmatpush.msra.mxu0 %v20
    %51 = vmatmul.f32.gmra.mxu0 %v30
    %v52 = vpop.f32.mrf.mxu0
    %v53 = vadd.f32 %v24, %v52
    %54 = vmatmul.f32.gmra.mxu0 %v33
    %v55 = vpop.f32.mrf.mxu0
    %v56 = vadd.f32 %v24, %v55
    %57 = vdwg.mxu0
    %58 = vmatpush.msra.mxu0 0.0
    %59 = vmatpush.msra.mxu0 0.0
    %60 = vmatpush.msra.mxu0 0.0
    %61 = vmatpush.msra.mxu0 0.0
    %62 = vmatpush.msra.mxu0 0.0
    %63 = vmatpush.msra.mxu0 0.0
    %64 = vmatpush.msra.mxu0 0.0
    %65 = vmatpush.msra.mxu0 0.0
    %66 = vmatpush.msra.mxu0 0.0
    %67 = vmatpush.msra.mxu0 0.0
    %68 = vmatpush.msra.mxu0 0.0
    %69 = vmatpush.msra.mxu0 0.0
    %70 = vmatpush.msra.mxu0 0.0
    %71 = vmatpush.msra.mxu0 0.0
    %72 = vmatpush.msra.mxu0 0.0
    %73 = vmatpush.msra.mxu0 %v21
    %74 = vmatmul.f32.gmra.mxu0 %v30
    %v75 = vpop.f32.mrf.mxu0
    %v76 = vadd.f32 %v25, %v75
    %77 = vmatmul.f32.gmra.mxu0 %v33
    %v78 = vpop.f32.mrf.mxu0
    %v79 = vadd.f32 %v25, %v78
    %80 = vdwg.mxu0
    %v81 = vpack.c.bf16 %v53, %v53
    %v82 = vpack.c.bf16 %v56, %v56
    %83 = vst [vmem:[#allocation2] sm:$0xf] %v81
    %84 = vst [vmem:[#allocation2 + $0x4] sm:$0xf] %v82
    %v85 = vpack.c.bf16 %v76, %v76
    %v86 = vpack.c.bf16 %v79, %v79
    %87 = vst [vmem:[#allocation4] sm:$0xf] %v85
    %88 = vst [vmem:[#allocation4 + $0x4] sm:$0xf] %v86
    // Predicated region
    $region14: #{tpu_custom_call.1} parent=1 // pred_check
      _
    $region15: #{tpu_custom_call.1} parent=1 // pred_check_branch
      %90 = sbr.rel (0) target = $region17
    $region16: #{tpu_custom_call.1} parent=1 // pred_region
      %92 = vsyncadd [#allocation3], 0
      %s93 = sshll.u32 [#allocation2], 4
      %s94 = int_to_ptr.vmem [resolvable:$true] %s93
      %s95 = sshll.u32 %s3, 4
      %s96 = int_to_ptr.hbm [resolvable:$true] %s95
      %101 = dma.vmem_to_hbm [thread:$0]  %s94, 128, %s96, [#allocation3], 64, 64, 4
    $region17: #{tpu_custom_call.1} parent=1 // pred_fallthru
      _
    // Predicated region
    $region18: #{tpu_custom_call.1} parent=1 // pred_check
      _
    $region19: #{tpu_custom_call.1} parent=1 // pred_check_branch
      %103 = sbr.rel (0) target = $region21
    $region20: #{tpu_custom_call.1} parent=1 // pred_region
      %105 = vsyncadd [#allocation5], 0
      %s106 = sshll.u32 [#allocation4], 4
      %s107 = int_to_ptr.vmem [resolvable:$true] %s106
      %s108 = sshll.u32 %s4, 4
      %s109 = int_to_ptr.hbm [resolvable:$true] %s108
      %114 = dma.vmem_to_hbm [thread:$0]  %s107, 128, %s109, [#allocation5], 64, 64, 4
    $region21: #{tpu_custom_call.1} parent=1 // pred_fallthru
      _
    // Predicated region
    $region22: #{tpu_custom_call.1} parent=1 // pred_check
      _
    $region23: #{tpu_custom_call.1} parent=1 // pred_check_branch
      %116 = sbr.rel (0) target = $region25
    $region24: #{tpu_custom_call.1} parent=1 // pred_region
      %118 = dma.done [#allocation3], 128
    $region25: #{tpu_custom_call.1} parent=1 // pred_fallthru
      _
    // Predicated region
    $region26: #{tpu_custom_call.1} parent=1 // pred_check
      _
    $region27: #{tpu_custom_call.1} parent=1 // pred_check_branch
      %120 = sbr.rel (0) target = $region29
    $region28: #{tpu_custom_call.1} parent=1 // pred_region
      %122 = dma.done [#allocation5], 128
    $region29: #{tpu_custom_call.1} parent=1 // pred_fallthru
      _
    %123 = vsyncpa [#allocation3], 1
    %124 = vsyncpa [#allocation5], 1

</llo_original>
